<compile_context>
chip_gen: v5e
topology: v5e:2x2
jax: 0.10.0
libtpu: 0.0.40
codegen_flags: <defaults>
</compile_context>

<pallas_src>
import functools

import jax
import jax.numpy as jnp
from jax import lax
from jax.experimental import pallas as pl
from jax.experimental.pallas import tpu as pltpu

# ---------------- MoCo hyper-parameters (small synthetic config) -------------
DIM = 32        # feature dimension (module default 128, shrunk for the test)
                # TODO(synk): benchmark at DIM=128 -- at DIM=32 only 1/4 of the
                # vreg lanes / MXU contraction depth is used.
K_QUEUE = 256   # queue size (module default 11408); K % batch == 0
TK = 128        # queue-row tile (multiple of 128; use 256 on v6e/v7x at prod)
M_MOM = 0.999   # momentum for the key encoder
TEMP = 0.07     # softmax temperature
EPS = 1e-12     # F.normalize eps


# ============================ Fused Pallas kernel ============================
def _moco_fused_kernel(ptr_ref, pooled_q_ref, pooled_k_ref, wq_ref, bq_ref,
                       wk_ref, bk_ref, queue_tile_ref,
                       l_pos_ref, l_neg_ref, feat_ref,
                       wk_new_ref, bk_new_ref, queue_hbm_ref,
                       qn_ref, kn_ref, dma_sem,
                       *, m, inv_temp, eps):
    i = pl.program_id(0)
    nt = pl.num_programs(0)
    # dot_general contracting dim 1 of both operands (NT layout -> no XLU
    # relayout before the MXU push).
    dims = (((1,), (1,)), ((), ()))

    # ---- prologue (tile 0 only): momentum lerp, fc, normalize, l_pos ----
    @pl.when(i == 0)
    def _prologue():
        wk_new = wk_ref[...] * m + wq_ref[...] * (1.0 - m)
        bk_new = bk_ref[...] * m + bq_ref[...] * (1.0 - m)
        wk_new_ref[...] = wk_new
        bk_new_ref[...] = bk_new

        q = lax.dot_general(pooled_q_ref[...], wq_ref[...], dims,
                            preferred_element_type=jnp.float32) + bq_ref[...]
        k = lax.dot_general(pooled_k_ref[...], wk_new, dims,
                            preferred_element_type=jnp.float32) + bk_new
        feat_ref[...] = q  # backbone_feature (pre-normalization, as in reference)

        # F.normalize(x, dim=1) == x * rsqrt(max(||x||^2, eps^2))  (EUP slot)
        qn = q * lax.rsqrt(jnp.maximum(jnp.sum(q * q, axis=1, keepdims=True),
                                       eps * eps))
        kn = k * lax.rsqrt(jnp.maximum(jnp.sum(k * k, axis=1, keepdims=True),
                                       eps * eps))
        qn_ref[...] = qn
        kn_ref[...] = kn
        l_pos_ref[...] = jnp.sum(qn * kn, axis=1, keepdims=True) * inv_temp

    # ---- per-tile l_neg block (queue stored (K, C): keys are rows) ----
    # TODO(synk): at production shapes cast qn / the queue tile to bf16 (f32
    # accumulation) to halve queue HBM traffic on v6e/v7x (int8 + per-row
    # scales on v5e); kept f32 here to match the reference buffer dtype.
    l_neg_ref[...] = lax.dot_general(qn_ref[...], queue_tile_ref[...], dims,
                                     preferred_element_type=jnp.float32) * inv_temp

    # ---- epilogue (last tile only): dequeue & enqueue -------------------
    # Only the N new rows are written back to the HBM queue (which is aliased
    # to the queue input).  Every queue tile read for l_neg has already
    # completed by the time the last tile's body runs, so this write cannot
    # clobber rows that are still pending a read (no wraparound: the reference
    # asserts K % batch == 0, so rows [ptr, ptr+N) never straddle tiles).
    @pl.when(i == nt - 1)
    def _enqueue():
        n = kn_ref.shape[0]
        ptr = pl.multiple_of(ptr_ref[0], n)
        cp = pltpu.make_async_copy(
            kn_ref, queue_hbm_ref.at[pl.ds(ptr, n), :], dma_sem)
        cp.start()
        cp.wait()


def moco_fused_head(queue_ptr, pooled_q, pooled_k, fc_wq, fc_bq, fc_wk, fc_bk,
                    queue):
    n, cin = pooled_q.shape
    dim = fc_wq.shape[0]
    kq = queue.shape[0]
    assert kq % TK == 0 and kq % n == 0
    nt = kq // TK
    kernel = functools.partial(_moco_fused_kernel, m=M_MOM,
                               inv_temp=1.0 / TEMP, eps=EPS)

    def full2d(r, c):
        return pl.BlockSpec((r, c), lambda i: (0, 0))

    return pl.pallas_call(
        kernel,
        out_shape=(
            jax.ShapeDtypeStruct((n, 1), jnp.float32),      # l_pos
            jax.ShapeDtypeStruct((n, kq), jnp.float32),     # l_neg (lane-dense)
            jax.ShapeDtypeStruct((n, dim), jnp.float32),    # backbone feature
            jax.ShapeDtypeStruct((dim, cin), jnp.float32),  # new fc_w_k
            jax.ShapeDtypeStruct((1, dim), jnp.float32),    # new fc_b_k
            jax.ShapeDtypeStruct((kq, dim), jnp.float32),   # updated queue
        ),
        grid=(nt,),
        in_specs=[
            pl.BlockSpec(memory_space=pltpu.MemorySpace.SMEM),   # queue_ptr
            full2d(n, cin),                                       # pooled_q
            full2d(n, cin),                                       # pooled_k
            full2d(dim, cin),                                     # fc_w_q
            full2d(1, dim),                                       # fc_b_q
            full2d(dim, cin),                                     # fc_w_k
            full2d(1, dim),                                       # fc_b_k
            pl.BlockSpec((TK, dim), lambda i: (i, 0)),            # queue tiles
        ],
        out_specs=(
            full2d(n, 1),                                         # l_pos
            pl.BlockSpec((n, TK), lambda i: (0, i)),              # l_neg tiles
            full2d(n, dim),                                       # feature
            full2d(dim, cin),                                     # fc_w_k new
            full2d(1, dim),                                       # fc_b_k new
            pl.BlockSpec(memory_space=pl.ANY),                    # queue stays in HBM
        ),
        scratch_shapes=[
            pltpu.VMEM((n, dim), jnp.float32),   # qn (persists across tiles)
            pltpu.VMEM((n, dim), jnp.float32),   # kn (enqueued on last tile)
            pltpu.SemaphoreType.DMA(()),
        ],
        input_output_aliases={7: 5},   # queue input <-> updated-queue output
        # TODO(synk): "parallel" on the queue axis would split l_neg tiles
        # across the two v7x TensorCores, but the prologue/scratch/enqueue
        # would then have to be replicated per core; kept "arbitrary" here.
        compiler_params=pltpu.CompilerParams(
            dimension_semantics=("arbitrary",)),
    )(queue_ptr, pooled_q, pooled_k, fc_wq, fc_bq.reshape(1, dim),
      fc_wk, fc_bk.reshape(1, dim), queue)


# ====================== Synthetic base encoder (glue) ========================
# Children structure mirrors a ResNet-like encoder:
# ll = [conv1, bn1, relu, maxpool, layer1, layer2, layer3, layer4, avgpool, fc]
def _conv2d(x, w, stride, padding):
    return lax.conv_general_dilated(
        x, w, window_strides=(stride, stride),
        padding=[(padding, padding), (padding, padding)],
        dimension_numbers=("NCHW", "OIHW", "NCHW"))


def _batchnorm(x, gamma, beta, eps=1e-5):
    # TODO(synk): batch statistics only (train mode); no running mean/var.
    mean = jnp.mean(x, axis=(0, 2, 3), keepdims=True)
    var = jnp.var(x, axis=(0, 2, 3), keepdims=True)
    xn = (x - mean) / jnp.sqrt(var + eps)
    return gamma.reshape(1, -1, 1, 1) * xn + beta.reshape(1, -1, 1, 1)


def _maxpool2(x):
    return lax.reduce_window(x, -jnp.inf, lax.max, (1, 1, 2, 2), (1, 1, 2, 2),
                             "VALID")


def init_encoder_params(key):
    ks = jax.random.split(key, 6)

    def conv_w(k, cout, cin, kh=3, kw=3):
        fan_in = cin * kh * kw
        return jax.random.normal(k, (cout, cin, kh, kw), jnp.float32) / jnp.sqrt(fan_in)

    return {
        "conv1_w": conv_w(ks[0], 8, 3),
        "bn1_g": jnp.ones((8,), jnp.float32),
        "bn1_b": jnp.zeros((8,), jnp.float32),
        "layer1_w": conv_w(ks[1], 8, 8),
        "layer2_w": conv_w(ks[2], 16, 8),
        "layer3_w": conv_w(ks[3], 32, 16),
        "layer4_w": conv_w(ks[4], 64, 32),
        "fc_w": jax.random.normal(ks[5], (DIM, 64), jnp.float32) / jnp.sqrt(64.0),
        "fc_b": jnp.zeros((DIM,), jnp.float32),
    }


def encoder_backbone(p, x):
    # ll[:5] = conv1, bn1, relu, maxpool, layer1  -> q_l1
    h = _conv2d(x, p["conv1_w"], 1, 1)
    h = _batchnorm(h, p["bn1_g"], p["bn1_b"])
    h = jax.nn.relu(h)
    h = _maxpool2(h)
    l1 = jax.nn.relu(_conv2d(h, p["layer1_w"], 1, 1))
    l2 = jax.nn.relu(_conv2d(l1, p["layer2_w"], 2, 1))   # ll[5]  -> q_l2
    l3 = jax.nn.relu(_conv2d(l2, p["layer3_w"], 2, 1))   # ll[6]  -> q_l3
    l4 = jax.nn.relu(_conv2d(l3, p["layer4_w"], 2, 1))   # ll[7]  -> q_l4
    pooled = jnp.mean(l4, axis=(2, 3))                   # ll[8] avgpool -> (N, 64)
    return pooled, l1, l2, l3, l4                        # fc (ll[9]) is in Pallas


# ============================ MoCo forward ===================================
# donate_argnums=(2,): the queue buffer is donated so the in-kernel aliasing
# (input_output_aliases) does not trigger a defensive full-queue copy in XLA.
@functools.partial(jax.jit, donate_argnums=(2,))
def moco_forward(params_q, params_k, queue, queue_ptr, im_q, im_k, shuffle_key):
    # ---- query path (backbone in plain JAX; fc lives in the fused kernel) ----
    pooled_q, q_l1, q_l2, q_l3, q_l4 = encoder_backbone(params_q, im_q)

    # ---- key path (no-grad in reference) ----
    # momentum-update conv/bn params in plain JAX (tiny; XLA fuses); the fc
    # momentum lerp is folded into the fused Pallas kernel below.
    params_k_new = {
        name: params_k[name] * M_MOM + params_q[name] * (1.0 - M_MOM)
        for name in params_q if name not in ("fc_w", "fc_b")
    }
    # single-device DDP: all_gather == identity; randperm over the local batch.
    idx = jax.random.permutation(shuffle_key, im_k.shape[0])
    idx_unshuffle = jnp.argsort(idx)
    pooled_k_sh, _, _, _, _ = encoder_backbone(params_k_new, im_k[idx])
    # fc + L2-normalize are row-wise, so unshuffle commutes to pooled features.
    pooled_k = pooled_k_sh[idx_unshuffle]

    # ---- fused head: fc(q), fc(k) with momentum-updated weights, normalize,
    #      l_pos / l_neg * 1/T, and in-place N-row dequeue/enqueue of the queue ----
    (l_pos, l_neg, backbone_feature,
     fc_wk_new, fc_bk_new, queue_new) = moco_fused_head(
        queue_ptr, pooled_q, pooled_k,
        params_q["fc_w"], params_q["fc_b"],
        params_k["fc_w"], params_k["fc_b"],
        queue)

    # TODO(synk): this concat re-streams the logits through HBM once; the
    # alternative is emitting a 128-aligned padded logits slab from the kernel
    # and adapting the consumer's label index.
    logits = jnp.concatenate([l_pos, l_neg], axis=1)
    labels = jnp.zeros((logits.shape[0],), jnp.int32)

    params_k_new["fc_w"] = fc_wk_new
    params_k_new["fc_b"] = fc_bk_new.reshape(-1)

    batch = pooled_k.shape[0]
    queue_ptr_new = (queue_ptr + batch) % K_QUEUE

    outputs = (logits, labels, backbone_feature, q_l1, q_l2, q_l3, q_l4)
    new_state = (params_k_new, queue_new, queue_ptr_new)
    return outputs, new_state


# ================================ main =======================================
if __name__ == "__main__":
    key = jax.random.PRNGKey(0)
    k_enc, k_queue, k_shuffle, k_imq, k_imk = jax.random.split(key, 5)

    params_q = init_encoder_params(k_enc)
    # key encoder initialized as a copy of the query encoder (as in __init__)
    params_k = {n: v for n, v in params_q.items()}

    # module buffer is (dim, K) normalized along dim 0; stored transposed here
    # ((K, dim), keys as rows) so the enqueue writes rows and l_neg contracts
    # the last dims.  Semantics are identical.
    queue0 = jax.random.normal(k_queue, (DIM, K_QUEUE), jnp.float32)
    queue0 = queue0 / jnp.linalg.norm(queue0, axis=0, keepdims=True)
    queue = queue0.T
    queue_ptr = jnp.zeros((1,), jnp.int32)

    im_q = jax.random.normal(k_imq, (2, 3, 16, 16), jnp.float32)
    im_k = jax.random.normal(k_imk, (2, 3, 16, 16), jnp.float32)

    outputs, new_state = moco_forward(
        params_q, params_k, queue, queue_ptr, im_q, im_k, k_shuffle)
    jax.block_until_ready(outputs)
    jax.block_until_ready(new_state)

    logits, labels, backbone_feature, q_l1, q_l2, q_l3, q_l4 = outputs
    params_k_new, queue_new, queue_ptr_new = new_state
    assert logits.shape == (2, 1 + K_QUEUE)
    assert labels.shape == (2,)
    assert backbone_feature.shape == (2, DIM)
    assert queue_new.shape == (K_QUEUE, DIM)
    assert params_k_new["fc_w"].shape == (DIM, 64)
    assert int(queue_ptr_new[0]) == 2
    print("KERNEL_OK")
</pallas_src>

<mosaic_0001>
module attributes {stable_mosaic.version = 11 : i64} {
  func.func @_moco_fused_kernel(%arg0: i32, %arg1: memref<1xi32, #tpu.memory_space<smem>>, %arg2: memref<2x64xf32, #tpu.memory_space<vmem>>, %arg3: memref<2x64xf32, #tpu.memory_space<vmem>>, %arg4: memref<32x64xf32, #tpu.memory_space<vmem>>, %arg5: memref<1x32xf32, #tpu.memory_space<vmem>>, %arg6: memref<32x64xf32, #tpu.memory_space<vmem>>, %arg7: memref<1x32xf32, #tpu.memory_space<vmem>>, %arg8: memref<128x32xf32, #tpu.memory_space<vmem>>, %arg9: memref<2x1xf32, #tpu.memory_space<vmem>>, %arg10: memref<2x128xf32, #tpu.memory_space<vmem>>, %arg11: memref<2x32xf32, #tpu.memory_space<vmem>>, %arg12: memref<32x64xf32, #tpu.memory_space<vmem>>, %arg13: memref<1x32xf32, #tpu.memory_space<vmem>>, %arg14: memref<256x32xf32, #tpu.memory_space<any>>, %arg15: memref<2x32xf32, #tpu.memory_space<vmem>>, %arg16: memref<2x32xf32, #tpu.memory_space<vmem>>, %arg17: memref<!tpu.dma_semaphore, #tpu.memory_space<semaphore_mem>>) attributes {dimension_semantics = [#tpu.dimension_semantics<arbitrary>], iteration_bounds = array<i64: 2>, scalar_prefetch = 0 : i64, scratch_operands = 3 : i64, tpu.core_type = #tpu.core_type<tc>, window_params = [{transform_indices = @transform_0, window_bounds = array<i64: 1>}, {pipeline_mode = #tpu.pipeline_mode<synchronous>, transform_indices = @transform_1, window_bounds = array<i64: 2, 64>}, {pipeline_mode = #tpu.pipeline_mode<synchronous>, transform_indices = @transform_2, window_bounds = array<i64: 2, 64>}, {pipeline_mode = #tpu.pipeline_mode<synchronous>, transform_indices = @transform_3, window_bounds = array<i64: 32, 64>}, {pipeline_mode = #tpu.pipeline_mode<synchronous>, transform_indices = @transform_4, window_bounds = array<i64: 1, 32>}, {pipeline_mode = #tpu.pipeline_mode<synchronous>, transform_indices = @transform_5, window_bounds = array<i64: 32, 64>}, {pipeline_mode = #tpu.pipeline_mode<synchronous>, transform_indices = @transform_6, window_bounds = array<i64: 1, 32>}, {transform_indices = @transform_7, window_bounds = array<i64: 128, 32>}, {pipeline_mode = #tpu.pipeline_mode<synchronous>, transform_indices = @transform_8, window_bounds = array<i64: 2, 1>}, {transform_indices = @transform_9, window_bounds = array<i64: 2, 128>}, {pipeline_mode = #tpu.pipeline_mode<synchronous>, transform_indices = @transform_10, window_bounds = array<i64: 2, 32>}, {pipeline_mode = #tpu.pipeline_mode<synchronous>, transform_indices = @transform_11, window_bounds = array<i64: 32, 64>}, {pipeline_mode = #tpu.pipeline_mode<synchronous>, transform_indices = @transform_12, window_bounds = array<i64: 1, 32>}, {}]} {
    %c0_i32 = arith.constant 0 : i32
    %0 = arith.cmpi eq, %arg0, %c0_i32 : i32
    %1 = arith.extui %0 : i1 to i32
    %c0_i32_0 = arith.constant 0 : i32
    %2 = arith.cmpi ne, %1, %c0_i32_0 : i32
    scf.if %2 {
      %c0_8 = arith.constant 0 : index
      %c0_9 = arith.constant 0 : index
      %12 = vector.load %arg6[%c0_8, %c0_9] : memref<32x64xf32, #tpu.memory_space<vmem>>, vector<32x64xf32>
      %cst_10 = arith.constant 9.990000e-01 : f32
      %13 = vector.broadcast %cst_10 : f32 to vector<32x64xf32>
      %14 = arith.mulf %12, %13 : vector<32x64xf32>
      %c0_11 = arith.constant 0 : index
      %c0_12 = arith.constant 0 : index
      %15 = vector.load %arg4[%c0_11, %c0_12] : memref<32x64xf32, #tpu.memory_space<vmem>>, vector<32x64xf32>
      %cst_13 = arith.constant 1.000000e-03 : f32
      %16 = vector.broadcast %cst_13 : f32 to vector<32x64xf32>
      %17 = arith.mulf %15, %16 : vector<32x64xf32>
      %18 = arith.addf %14, %17 : vector<32x64xf32>
      %c0_14 = arith.constant 0 : index
      %c0_15 = arith.constant 0 : index
      %19 = vector.load %arg7[%c0_14, %c0_15] : memref<1x32xf32, #tpu.memory_space<vmem>>, vector<1x32xf32>
      %cst_16 = arith.constant 9.990000e-01 : f32
      %20 = vector.broadcast %cst_16 : f32 to vector<1x32xf32>
      %21 = arith.mulf %19, %20 : vector<1x32xf32>
      %c0_17 = arith.constant 0 : index
      %c0_18 = arith.constant 0 : index
      %22 = vector.load %arg5[%c0_17, %c0_18] : memref<1x32xf32, #tpu.memory_space<vmem>>, vector<1x32xf32>
      %cst_19 = arith.constant 1.000000e-03 : f32
      %23 = vector.broadcast %cst_19 : f32 to vector<1x32xf32>
      %24 = arith.mulf %22, %23 : vector<1x32xf32>
      %25 = arith.addf %21, %24 : vector<1x32xf32>
      %c0_20 = arith.constant 0 : index
      %c0_21 = arith.constant 0 : index
      %26 = vector.load %arg12[%c0_20, %c0_21] : memref<32x64xf32, #tpu.memory_space<vmem>>, vector<32x64xf32>
      tpu.vector_store %arg12[%c0_20, %c0_21], %18 {strides = array<i32>} : memref<32x64xf32, #tpu.memory_space<vmem>>, vector<32x64xf32>,
      %c0_22 = arith.constant 0 : index
      %c0_23 = arith.constant 0 : index
      %27 = vector.load %arg13[%c0_22, %c0_23] : memref<1x32xf32, #tpu.memory_space<vmem>>, vector<1x32xf32>
      tpu.vector_store %arg13[%c0_22, %c0_23], %25 {strides = array<i32>} : memref<1x32xf32, #tpu.memory_space<vmem>>, vector<1x32xf32>,
      %c0_24 = arith.constant 0 : index
      %c0_25 = arith.constant 0 : index
      %28 = vector.load %arg2[%c0_24, %c0_25] : memref<2x64xf32, #tpu.memory_space<vmem>>, vector<2x64xf32>
      %c0_26 = arith.constant 0 : index
      %c0_27 = arith.constant 0 : index
      %29 = vector.load %arg4[%c0_26, %c0_27] : memref<32x64xf32, #tpu.memory_space<vmem>>, vector<32x64xf32>
      %cst_28 = arith.constant dense<0.000000e+00> : vector<2x32xf32>
      %30 = tpu.matmul %28, %29, %cst_28 {dimension_numbers = #tpu.dot_dimension_numbers<[1], [1], [0], [0], [0, 0, 1, 0], [], []>} : vector<2x64xf32>, vector<32x64xf32>, vector<2x32xf32> -> vector<2x32xf32>
      %c0_29 = arith.constant 0 : index
      %c0_30 = arith.constant 0 : index
      %31 = vector.load %arg5[%c0_29, %c0_30] : memref<1x32xf32, #tpu.memory_space<vmem>>, vector<1x32xf32>
      %32 = vector.broadcast %31 : vector<1x32xf32> to vector<2x32xf32>
      %33 = arith.addf %30, %32 : vector<2x32xf32>
      %c0_31 = arith.constant 0 : index
      %c0_32 = arith.constant 0 : index
      %34 = vector.load %arg3[%c0_31, %c0_32] : memref<2x64xf32, #tpu.memory_space<vmem>>, vector<2x64xf32>
      %cst_33 = arith.constant dense<0.000000e+00> : vector<2x32xf32>
      %35 = tpu.matmul %34, %18, %cst_33 {dimension_numbers = #tpu.dot_dimension_numbers<[1], [1], [0], [0], [0, 0, 1, 0], [], []>} : vector<2x64xf32>, vector<32x64xf32>, vector<2x32xf32> -> vector<2x32xf32>
      %36 = vector.broadcast %25 : vector<1x32xf32> to vector<2x32xf32>
      %37 = arith.addf %35, %36 : vector<2x32xf32>
      %c0_34 = arith.constant 0 : index
      %c0_35 = arith.constant 0 : index
      %38 = vector.load %arg11[%c0_34, %c0_35] : memref<2x32xf32, #tpu.memory_space<vmem>>, vector<2x32xf32>
      tpu.vector_store %arg11[%c0_34, %c0_35], %33 {strides = array<i32>} : memref<2x32xf32, #tpu.memory_space<vmem>>, vector<2x32xf32>,
      %39 = arith.mulf %33, %33 : vector<2x32xf32>
      %cst_36 = arith.constant dense<0.000000e+00> : vector<2xf32>
      %40 = vector.multi_reduction <add>, %39, %cst_36 [1] : vector<2x32xf32> to vector<2xf32>
      %41 = vector.shape_cast %40 : vector<2xf32> to vector<2x1xf32>
      %cst_37 = arith.constant 1.000000e-24 : f32
      %42 = vector.broadcast %cst_37 : f32 to vector<2x1xf32>
      %43 = arith.maximumf %41, %42 : vector<2x1xf32>
      %44 = math.rsqrt %43 : vector<2x1xf32>
      %45 = vector.broadcast %44 : vector<2x1xf32> to vector<2x32xf32>
      %46 = arith.mulf %33, %45 : vector<2x32xf32>
      %47 = arith.mulf %37, %37 : vector<2x32xf32>
      %cst_38 = arith.constant dense<0.000000e+00> : vector<2xf32>
      %48 = vector.multi_reduction <add>, %47, %cst_38 [1] : vector<2x32xf32> to vector<2xf32>
      %49 = vector.shape_cast %48 : vector<2xf32> to vector<2x1xf32>
      %cst_39 = arith.constant 1.000000e-24 : f32
      %50 = vector.broadcast %cst_39 : f32 to vector<2x1xf32>
      %51 = arith.maximumf %49, %50 : vector<2x1xf32>
      %52 = math.rsqrt %51 : vector<2x1xf32>
      %53 = vector.broadcast %52 : vector<2x1xf32> to vector<2x32xf32>
      %54 = arith.mulf %37, %53 : vector<2x32xf32>
      %c0_40 = arith.constant 0 : index
      %c0_41 = arith.constant 0 : index
      %55 = vector.load %arg15[%c0_40, %c0_41] : memref<2x32xf32, #tpu.memory_space<vmem>>, vector<2x32xf32>
      tpu.vector_store %arg15[%c0_40, %c0_41], %46 {strides = array<i32>} : memref<2x32xf32, #tpu.memory_space<vmem>>, vector<2x32xf32>,
      %c0_42 = arith.constant 0 : index
      %c0_43 = arith.constant 0 : index
      %56 = vector.load %arg16[%c0_42, %c0_43] : memref<2x32xf32, #tpu.memory_space<vmem>>, vector<2x32xf32>
      tpu.vector_store %arg16[%c0_42, %c0_43], %54 {strides = array<i32>} : memref<2x32xf32, #tpu.memory_space<vmem>>, vector<2x32xf32>,
      %57 = arith.mulf %46, %54 : vector<2x32xf32>
      %cst_44 = arith.constant dense<0.000000e+00> : vector<2xf32>
      %58 = vector.multi_reduction <add>, %57, %cst_44 [1] : vector<2x32xf32> to vector<2xf32>
      %59 = vector.shape_cast %58 : vector<2xf32> to vector<2x1xf32>
      %cst_45 = arith.constant 14.2857141 : f32
      %60 = vector.broadcast %cst_45 : f32 to vector<2x1xf32>
      %61 = arith.mulf %59, %60 : vector<2x1xf32>
      %c0_46 = arith.constant 0 : index
      %c0_47 = arith.constant 0 : index
      %62 = vector.load %arg9[%c0_46, %c0_47] : memref<2x1xf32, #tpu.memory_space<vmem>>, vector<2x1xf32>
      tpu.vector_store %arg9[%c0_46, %c0_47], %61 {strides = array<i32>} : memref<2x1xf32, #tpu.memory_space<vmem>>, vector<2x1xf32>,
    } else {
    }
    %c0 = arith.constant 0 : index
    %c0_1 = arith.constant 0 : index
    %3 = vector.load %arg15[%c0, %c0_1] : memref<2x32xf32, #tpu.memory_space<vmem>>, vector<2x32xf32>
    %c0_2 = arith.constant 0 : index
    %c0_3 = arith.constant 0 : index
    %4 = vector.load %arg8[%c0_2, %c0_3] : memref<128x32xf32, #tpu.memory_space<vmem>>, vector<128x32xf32>
    %cst = arith.constant dense<0.000000e+00> : vector<2x128xf32>
    %5 = tpu.matmul %3, %4, %cst {dimension_numbers = #tpu.dot_dimension_numbers<[1], [1], [0], [0], [0, 0, 1, 0], [], []>} : vector<2x32xf32>, vector<128x32xf32>, vector<2x128xf32> -> vector<2x128xf32>
    %cst_4 = arith.constant 14.2857141 : f32
    %6 = vector.broadcast %cst_4 : f32 to vector<2x128xf32>
    %7 = arith.mulf %5, %6 : vector<2x128xf32>
    %c0_5 = arith.constant 0 : index
    %c0_6 = arith.constant 0 : index
    %8 = vector.load %arg10[%c0_5, %c0_6] : memref<2x128xf32, #tpu.memory_space<vmem>>, vector<2x128xf32>
    tpu.vector_store %arg10[%c0_5, %c0_6], %7 {strides = array<i32>} : memref<2x128xf32, #tpu.memory_space<vmem>>, vector<2x128xf32>,
    %c1_i32 = arith.constant 1 : i32
    %9 = arith.cmpi eq, %arg0, %c1_i32 : i32
    %10 = arith.extui %9 : i1 to i32
    %c0_i32_7 = arith.constant 0 : i32
    %11 = arith.cmpi ne, %10, %c0_i32_7 : i32
    scf.if %11 {
      %c0_8 = arith.constant 0 : index
      %12 = memref.load %arg1[%c0_8] : memref<1xi32, #tpu.memory_space<smem>>
      %13 = tpu.assume_multiple %12, 2 : i32
      %c0_i32_9 = arith.constant 0 : i32
      %14 = tpu.memref_slice %arg14[%13, %c0_i32_9] : memref<256x32xf32, #tpu.memory_space<any>> -> memref<2x32xf32, #tpu.memory_space<any>>
      tpu.enqueue_dma source(%arg16 : memref<2x32xf32, #tpu.memory_space<vmem>>) target(%14 : memref<2x32xf32, #tpu.memory_space<any>>) target_semaphore(%arg17 : memref<!tpu.dma_semaphore, #tpu.memory_space<semaphore_mem>>)
      %c0_i32_10 = arith.constant 0 : i32
      %15 = tpu.memref_slice %arg14[%13, %c0_i32_10] : memref<256x32xf32, #tpu.memory_space<any>> -> memref<2x32xf32, #tpu.memory_space<any>>
      tpu.wait_dma2 semaphore(%arg17 : memref<!tpu.dma_semaphore, #tpu.memory_space<semaphore_mem>>) src(%arg16 : memref<2x32xf32, #tpu.memory_space<vmem>>) dst(%15 : memref<2x32xf32, #tpu.memory_space<any>>)
    } else {
    }
    return
  }
  func.func @transform_0(%arg0: i32) -> i32 {
    %c0_i32 = arith.constant 0 : i32
    %c0_i32_0 = arith.constant 0 : i32
    return %c0_i32 : i32
  }
  func.func @transform_1(%arg0: i32) -> (i32, i32) {
    %c0_i32 = arith.constant 0 : i32
    %c0_i32_0 = arith.constant 0 : i32
    %c0_i32_1 = arith.constant 0 : i32
    return %c0_i32, %c0_i32_0 : i32, i32
  }
  func.func @transform_2(%arg0: i32) -> (i32, i32) {
    %c0_i32 = arith.constant 0 : i32
    %c0_i32_0 = arith.constant 0 : i32
    %c0_i32_1 = arith.constant 0 : i32
    return %c0_i32, %c0_i32_0 : i32, i32
  }
  func.func @transform_3(%arg0: i32) -> (i32, i32) {
    %c0_i32 = arith.constant 0 : i32
    %c0_i32_0 = arith.constant 0 : i32
    %c0_i32_1 = arith.constant 0 : i32
    return %c0_i32, %c0_i32_0 : i32, i32
  }
  func.func @transform_4(%arg0: i32) -> (i32, i32) {
    %c0_i32 = arith.constant 0 : i32
    %c0_i32_0 = arith.constant 0 : i32
    %c0_i32_1 = arith.constant 0 : i32
    return %c0_i32, %c0_i32_0 : i32, i32
  }
  func.func @transform_5(%arg0: i32) -> (i32, i32) {
    %c0_i32 = arith.constant 0 : i32
    %c0_i32_0 = arith.constant 0 : i32
    %c0_i32_1 = arith.constant 0 : i32
    return %c0_i32, %c0_i32_0 : i32, i32
  }
  func.func @transform_6(%arg0: i32) -> (i32, i32) {
    %c0_i32 = arith.constant 0 : i32
    %c0_i32_0 = arith.constant 0 : i32
    %c0_i32_1 = arith.constant 0 : i32
    return %c0_i32, %c0_i32_0 : i32, i32
  }
  func.func @transform_7(%arg0: i32) -> (i32, i32) {
    %c0_i32 = arith.constant 0 : i32
    %c0_i32_0 = arith.constant 0 : i32
    return %arg0, %c0_i32 : i32, i32
  }
  func.func @transform_8(%arg0: i32) -> (i32, i32) {
    %c0_i32 = arith.constant 0 : i32
    %c0_i32_0 = arith.constant 0 : i32
    %c0_i32_1 = arith.constant 0 : i32
    return %c0_i32, %c0_i32_0 : i32, i32
  }
  func.func @transform_9(%arg0: i32) -> (i32, i32) {
    %c0_i32 = arith.constant 0 : i32
    %c0_i32_0 = arith.constant 0 : i32
    return %c0_i32, %arg0 : i32, i32
  }
  func.func @transform_10(%arg0: i32) -> (i32, i32) {
    %c0_i32 = arith.constant 0 : i32
    %c0_i32_0 = arith.constant 0 : i32
    %c0_i32_1 = arith.constant 0 : i32
    return %c0_i32, %c0_i32_0 : i32, i32
  }
  func.func @transform_11(%arg0: i32) -> (i32, i32) {
    %c0_i32 = arith.constant 0 : i32
    %c0_i32_0 = arith.constant 0 : i32
    %c0_i32_1 = arith.constant 0 : i32
    return %c0_i32, %c0_i32_0 : i32, i32
  }
  func.func @transform_12(%arg0: i32) -> (i32, i32) {
    %c0_i32 = arith.constant 0 : i32
    %c0_i32_0 = arith.constant 0 : i32
    %c0_i32_1 = arith.constant 0 : i32
    return %c0_i32, %c0_i32_0 : i32, i32
  }
}

</mosaic_0001>

<llo_original>
// kernel: reverse.1
$region0: #{reverse.1}
  #allocation0 [shape = 's32[1]{0}', space=sflag, size = 0x4, scoped, tag = 'scoped memory for reverse.1']
  %s0 = inlined_call_operand.vmem [shape: f32[64,32,3,3], index: 0, kind: input, shape index: {}]
  %s1 = inlined_call_operand.vmem [shape: bf16[64,32,3,3], index: 1, kind: output, shape index: {}]
  %s2 = scalar_lea.vmem %s0, 256
  %v3 = vld [vmem:[%s2] sm:$0xff]
  %v4 = vpack.c.bf16 0.0, %v3
  %5 = vst [vmem:[%s1] sm:$0xf] %v4
  %s6 = scalar_lea.vmem %s0, 160
  %v7 = vld [vmem:[%s6] sm:$0xff]
  %s8 = scalar_lea.vmem %s1, 48
  %v9 = vpack.c.bf16 0.0, %v7
  %10 = vst [vmem:[%s8] sm:$0xf] %v9
  %s11 = scalar_lea.vmem %s0, 64
  %v12 = vld [vmem:[%s11] sm:$0xff]
  %s13 = scalar_lea.vmem %s1, 96
  %v14 = vpack.c.bf16 0.0, %v12
  %15 = vst [vmem:[%s13] sm:$0xf] %v14
  %s16 = scalar_lea.vmem %s0, 224
  %v17 = vld [vmem:[%s16] sm:$0xff]
  %s18 = scalar_lea.vmem %s1, 16
  %v19 = vpack.c.bf16 0.0, %v17
  %20 = vst [vmem:[%s18] sm:$0xf] %v19
  %s21 = scalar_lea.vmem %s0, 128
  %v22 = vld [vmem:[%s21] sm:$0xff]
  %s23 = scalar_lea.vmem %s1, 64
  %v24 = vpack.c.bf16 0.0, %v22
  %25 = vst [vmem:[%s23] sm:$0xf] %v24
  %s26 = scalar_lea.vmem %s0, 32
  %v27 = vld [vmem:[%s26] sm:$0xff]
  %s28 = scalar_lea.vmem %s1, 112
  %v29 = vpack.c.bf16 0.0, %v27
  %30 = vst [vmem:[%s28] sm:$0xf] %v29
  %s31 = scalar_lea.vmem %s0, 192
  %v32 = vld [vmem:[%s31] sm:$0xff]
  %s33 = scalar_lea.vmem %s1, 32
  %v34 = vpack.c.bf16 0.0, %v32
  %35 = vst [vmem:[%s33] sm:$0xf] %v34
  %s36 = scalar_lea.vmem %s0, 96
  %v37 = vld [vmem:[%s36] sm:$0xff]
  %s38 = scalar_lea.vmem %s1, 80
  %v39 = vpack.c.bf16 0.0, %v37
  %40 = vst [vmem:[%s38] sm:$0xf] %v39
  %v41 = vld [vmem:[%s0] sm:$0xff]
  %s42 = scalar_lea.vmem %s1, 128
  %v43 = vpack.c.bf16 0.0, %v41
  %44 = vst [vmem:[%s42] sm:$0xf] %v43
  %s45 = scalar_lea.vmem %s0, 264
  %v46 = vld [vmem:[%s45] sm:$0xff]
  %s47 = scalar_lea.vmem %s1, 4
  %v48 = vpack.c.bf16 0.0, %v46
  %49 = vst [vmem:[%s47] sm:$0xf] %v48
  %s50 = scalar_lea.vmem %s0, 168
  %v51 = vld [vmem:[%s50] sm:$0xff]
  %s52 = scalar_lea.vmem %s1, 52
  %v53 = vpack.c.bf16 0.0, %v51
  %54 = vst [vmem:[%s52] sm:$0xf] %v53
  %s55 = scalar_lea.vmem %s0, 72
  %v56 = vld [vmem:[%s55] sm:$0xff]
  %s57 = scalar_lea.vmem %s1, 100
  %v58 = vpack.c.bf16 0.0, %v56
  %59 = vst [vmem:[%s57] sm:$0xf] %v58
  %s60 = scalar_lea.vmem %s0, 232
  %v61 = vld [vmem:[%s60] sm:$0xff]
  %s62 = scalar_lea.vmem %s1, 20
  %v63 = vpack.c.bf16 0.0, %v61
  %64 = vst [vmem:[%s62] sm:$0xf] %v63
  %s65 = scalar_lea.vmem %s0, 136
  %v66 = vld [vmem:[%s65] sm:$0xff]
  %s67 = scalar_lea.vmem %s1, 68
  %v68 = vpack.c.bf16 0.0, %v66
  %69 = vst [vmem:[%s67] sm:$0xf] %v68
  %s70 = scalar_lea.vmem %s0, 40
  %v71 = vld [vmem:[%s70] sm:$0xff]
  %s72 = scalar_lea.vmem %s1, 116
  %v73 = vpack.c.bf16 0.0, %v71
  %74 = vst [vmem:[%s72] sm:$0xf] %v73
  %s75 = scalar_lea.vmem %s0, 200
  %v76 = vld [vmem:[%s75] sm:$0xff]
  %s77 = scalar_lea.vmem %s1, 36
  %v78 = vpack.c.bf16 0.0, %v76
  %79 = vst [vmem:[%s77] sm:$0xf] %v78
  %s80 = scalar_lea.vmem %s0, 104
  %v81 = vld [vmem:[%s80] sm:$0xff]
  %s82 = scalar_lea.vmem %s1, 84
  %v83 = vpack.c.bf16 0.0, %v81
  %84 = vst [vmem:[%s82] sm:$0xf] %v83
  %s85 = scalar_lea.vmem %s0, 8
  %v86 = vld [vmem:[%s85] sm:$0xff]
  %s87 = scalar_lea.vmem %s1, 132
  %v88 = vpack.c.bf16 0.0, %v86
  %89 = vst [vmem:[%s87] sm:$0xf] %v88
  %s90 = scalar_lea.vmem %s0, 272
  %v91 = vld [vmem:[%s90] sm:$0xff]
  %s92 = scalar_lea.vmem %s1, 8
  %v93 = vpack.c.bf16 0.0, %v91
  %94 = vst [vmem:[%s92] sm:$0xf] %v93
  %s95 = scalar_lea.vmem %s0, 176
  %v96 = vld [vmem:[%s95] sm:$0xff]
  %s97 = scalar_lea.vmem %s1, 56
  %v98 = vpack.c.bf16 0.0, %v96
  %99 = vst [vmem:[%s97] sm:$0xf] %v98
  %s100 = scalar_lea.vmem %s0, 80
  %v101 = vld [vmem:[%s100] sm:$0xff]
  %s102 = scalar_lea.vmem %s1, 104
  %v103 = vpack.c.bf16 0.0, %v101
  %104 = vst [vmem:[%s102] sm:$0xf] %v103
  %s105 = scalar_lea.vmem %s0, 240
  %v106 = vld [vmem:[%s105] sm:$0xff]
  %s107 = scalar_lea.vmem %s1, 24
  %v108 = vpack.c.bf16 0.0, %v106
  %109 = vst [vmem:[%s107] sm:$0xf] %v108
  %s110 = scalar_lea.vmem %s0, 144
  %v111 = vld [vmem:[%s110] sm:$0xff]
  %s112 = scalar_lea.vmem %s1, 72
  %v113 = vpack.c.bf16 0.0, %v111
  %114 = vst [vmem:[%s112] sm:$0xf] %v113
  %s115 = scalar_lea.vmem %s0, 48
  %v116 = vld [vmem:[%s115] sm:$0xff]
  %s117 = scalar_lea.vmem %s1, 120
  %v118 = vpack.c.bf16 0.0, %v116
  %119 = vst [vmem:[%s117] sm:$0xf] %v118
  %s120 = scalar_lea.vmem %s0, 208
  %v121 = vld [vmem:[%s120] sm:$0xff]
  %s122 = scalar_lea.vmem %s1, 40
  %v123 = vpack.c.bf16 0.0, %v121
  %124 = vst [vmem:[%s122] sm:$0xf] %v123
  %s125 = scalar_lea.vmem %s0, 112
  %v126 = vld [vmem:[%s125] sm:$0xff]
  %s127 = scalar_lea.vmem %s1, 88
  %v128 = vpack.c.bf16 0.0, %v126
  %129 = vst [vmem:[%s127] sm:$0xf] %v128
  %s130 = scalar_lea.vmem %s0, 16
  %v131 = vld [vmem:[%s130] sm:$0xff]
  %s132 = scalar_lea.vmem %s1, 136
  %v133 = vpack.c.bf16 0.0, %v131
  %134 = vst [vmem:[%s132] sm:$0xf] %v133
  %s135 = scalar_lea.vmem %s0, 280
  %v136 = vld [vmem:[%s135] sm:$0xff]
  %s137 = scalar_lea.vmem %s1, 12
  %v138 = vpack.c.bf16 0.0, %v136
  %139 = vst [vmem:[%s137] sm:$0xf] %v138
  %s140 = scalar_lea.vmem %s0, 184
  %v141 = vld [vmem:[%s140] sm:$0xff]
  %s142 = scalar_lea.vmem %s1, 60
  %v143 = vpack.c.bf16 0.0, %v141
  %144 = vst [vmem:[%s142] sm:$0xf] %v143
  %s145 = scalar_lea.vmem %s0, 88
  %v146 = vld [vmem:[%s145] sm:$0xff]
  %s147 = scalar_lea.vmem %s1, 108
  %v148 = vpack.c.bf16 0.0, %v146
  %149 = vst [vmem:[%s147] sm:$0xf] %v148
  %s150 = scalar_lea.vmem %s0, 248
  %v151 = vld [vmem:[%s150] sm:$0xff]
  %s152 = scalar_lea.vmem %s1, 28
  %v153 = vpack.c.bf16 0.0, %v151
  %154 = vst [vmem:[%s152] sm:$0xf] %v153
  %s155 = scalar_lea.vmem %s0, 152
  %v156 = vld [vmem:[%s155] sm:$0xff]
  %s157 = scalar_lea.vmem %s1, 76
  %v158 = vpack.c.bf16 0.0, %v156
  %159 = vst [vmem:[%s157] sm:$0xf] %v158
  %s160 = scalar_lea.vmem %s0, 56
  %v161 = vld [vmem:[%s160] sm:$0xff]
  %s162 = scalar_lea.vmem %s1, 124
  %v163 = vpack.c.bf16 0.0, %v161
  %164 = vst [vmem:[%s162] sm:$0xf] %v163
  %s165 = scalar_lea.vmem %s0, 216
  %v166 = vld [vmem:[%s165] sm:$0xff]
  %s167 = scalar_lea.vmem %s1, 44
  %v168 = vpack.c.bf16 0.0, %v166
  %169 = vst [vmem:[%s167] sm:$0xf] %v168
  %s170 = scalar_lea.vmem %s0, 120
  %v171 = vld [vmem:[%s170] sm:$0xff]
  %s172 = scalar_lea.vmem %s1, 92
  %v173 = vpack.c.bf16 0.0, %v171
  %174 = vst [vmem:[%s172] sm:$0xf] %v173
  %s175 = scalar_lea.vmem %s0, 24
  %v176 = vld [vmem:[%s175] sm:$0xff]
  %s177 = scalar_lea.vmem %s1, 140
  %v178 = vpack.c.bf16 0.0, %v176
  %179 = vst [vmem:[%s177] sm:$0xf] %v178

// kernel: moco_forward.1
$region0: #{moco_forward.1}
  #allocation0 [shape = 'u32[]', space=smem, size = 0x4, offset = 0x4, fixed_abs, tag = 'smem constant byte address 0x4 - core index']
  #allocation1 [shape = 'u32[72,128]{1,0:T(1,128)}', space=vmem, size = 0x9000, scoped, tag = 'internal scratch']
  #allocation2 [shape = 'f32[2,32]{1,0:T(2,128)}', space=vmem, size = 0x400, scoped, tag = 'scratch operand']
  #allocation3 [shape = 'f32[2,32]{1,0:T(2,128)}', space=vmem, size = 0x400, scoped, tag = 'scratch operand']
  #allocation4 [shape = 's32[1]{0}', space=sflag, size = 0x4, scoped, tag = 'scratch operand']
  #allocation5 [shape = 's32[1]{0:T(128)S(6)}', space=smem, size = 0x200, scoped, tag = 'scoped memory for moco_forward.1']
  #allocation11 [shape = 's32[]', space=sflag, size = 0x4, offset = 0, fixed_abs, tag = 'sflag constant byte address 0x0 - dummy sync flag']
  %s0 = inlined_call_operand.<no memory space> [shape: s32[1], index: 0, kind: input, shape index: {}]
  %s1 = inlined_call_operand.vmem [shape: f32[2,64], index: 1, kind: input, shape index: {}]
  %s2 = inlined_call_operand.vmem [shape: f32[2,64], index: 2, kind: input, shape index: {}]
  %s3 = inlined_call_operand.vmem [shape: f32[32,64], index: 3, kind: input, shape index: {}]
  %s4 = inlined_call_operand.vmem [shape: f32[1,32], index: 4, kind: input, shape index: {}]
  %s5 = inlined_call_operand.vmem [shape: f32[32,64], index: 5, kind: input, shape index: {}]
  %s6 = inlined_call_operand.vmem [shape: f32[1,32], index: 6, kind: input, shape index: {}]
  %s7 = inlined_call_operand.vmem [shape: f32[256,32], index: 7, kind: input, shape index: {}, may-alias: {7,13}]
  %s8 = inlined_call_operand.vmem [shape: f32[2,1], index: 8, kind: output, shape index: {0}]
  %s9 = inlined_call_operand.vmem [shape: f32[2,256], index: 9, kind: output, shape index: {1}]
  %s10 = inlined_call_operand.hbm [shape: f32[2,32], index: 10, kind: output, shape index: {2}]
  %s11 = inlined_call_operand.hbm [shape: f32[32,64], index: 11, kind: output, shape index: {3}]
  %s12 = inlined_call_operand.hbm [shape: f32[1,32], index: 12, kind: output, shape index: {4}]
  %s13 = inlined_call_operand.vmem [shape: f32[256,32], index: 13, kind: output, shape index: {5}, may-alias: {7,13}]
  %14 = xla_tuple %s8, %s9, %s10, %s11, %s12, %s13
  %s15 = sld [smem:[#allocation0]]
  $region135: #{moco_forward.1} parent=0
    _
  %s17 = ssub.s32 1, %s15
  %s18 = scalar_select 0, %s17, %s15
  %19 = sst [smem:[#allocation5]] %s0
  $region1: #{moco_forward.1} parent=0
    #allocation6 [shape = 'u8[1024]{0}', space=vmem, size = 0x400, scoped, tag = 'output window, operand 2, single buffered']
    #allocation7 [shape = 's32[2]{0}', space=sflag, size = 0x8, scoped, tag = 'scoped memory for moco_forward.1']
    #allocation8 [shape = 'u8[16384]{0}', space=vmem, size = 0x4000, scoped, tag = 'output window, operand 3, single buffered']
    #allocation9 [shape = 's32[1]{0}', space=sflag, size = 0x4, scoped, tag = 'scoped memory for moco_forward.1']
    #allocation10 [shape = 'u8[512]{0}', space=vmem, size = 0x400, scoped, tag = 'output window, operand 4, single buffered']
    %20 = vsyncpa [#allocation7], 0
    %21 = vsyncpa [#allocation9], 0
    loop: start=0, step=1, limit=4
    $region2: #{moco_forward.1} parent=1 // loop_pre_header
      _
    $region3: #{moco_forward.1} parent=1 // loop_header
      %s23 = sphi 0, %s27
      %p24 = scmp.ge.s32.totalorder %s23, 4
      %s31 = sphi 0, %s31
      %s33 = sphi 0, %s31
      %s34 = sphi 0, %s33
      %s48 = sphi 0, %s34
      %s52 = sphi 0, %s52
      %s54 = sphi 0, %s52
      %s55 = sphi 0, %s54
      %s69 = sphi 0, %s55
      %s73 = sphi 0, %s73
      %s75 = sphi 0, %s73
      %s76 = sphi 0, %s75
      %s90 = sphi 0, %s76
      %s94 = sphi 0, %s94
      %s96 = sphi 0, %s94
      %s97 = sphi 0, %s96
      %s111 = sphi 0, %s97
      %s115 = sphi 0, %s115
      %s117 = sphi 0, %s115
      %s118 = sphi 0, %s117
      %s132 = sphi 0, %s118
      %s136 = sphi 0, %s136
      %s138 = sphi 0, %s136
      %s139 = sphi 0, %s138
      %s153 = sphi 0, %s139
      %s157 = sphi 0, %s157
      %s159 = sphi 0, %s157
      %s160 = sphi 0, %s159
      %s174 = sphi 0, %s160
      %s180 = sphi 0, %s182
      %s183 = sphi 0, %s180
      %s184 = sphi 0, %s183
      %s200 = sphi 0, %s184
      %s204 = sphi 0, %s204
      %s206 = sphi 0, %s204
      %s207 = sphi 0, %s206
      %s221 = sphi 0, %s207
      %s227 = sphi 0, %s229
      %s230 = sphi 0, %s227
      %s231 = sphi 0, %s230
      %s247 = sphi 0, %s231
      %s251 = sphi 0, %s251
      %s253 = sphi 0, %s251
      %s254 = sphi 0, %s253
      %s268 = sphi 0, %s254
      %s272 = sphi 0, %s272
      %s274 = sphi 0, %s272
      %s275 = sphi 0, %s274
      %s289 = sphi 0, %s275
      %s293 = sphi 0, %s293
      %s295 = sphi 0, %s293
      %s296 = sphi 0, %s295
      %s310 = sphi 0, %s296
    $region4: #{moco_forward.1} parent=1 // loop_header_branch
      %26 = sbr.rel (%p24) target = $region8
    $region5: #{moco_forward.1} parent=1 // loop_body
      %s28 = ssub.s32 %s23, 1
      %s29 = ssub.s32 %s23, 2
      %s30 = sadd.s32 %s23, 1
      %s32 = sadd.s32 %s31, 1
      %p35 = scmp.eq.s32.totalorder %s23, 1
      %p36 = scmp.ne.s32.totalorder %s31, %s33
      %p37 = scmp.eq.s32.totalorder %s23, 0
      %p38 = por %p36, %p37
      %p39 = scmp.ne.s32.totalorder %s31, %s33
      %p40 = scmp.eq.s32.totalorder %s28, 1
      %p41 = por %p39, %p40
      %p42 = scmp.ne.s32.totalorder %s33, %s34
      %p43 = scmp.eq.s32.totalorder %s28, 0
      %p44 = por %p42, %p43
      %p45 = scmp.ne.s32.totalorder %s33, %s34
      %p46 = scmp.eq.s32.totalorder %s29, 1
      %p47 = por %p45, %p46
      %p49 = scmp.ne.s32.totalorder %s34, %s48
      %p50 = scmp.eq.s32.totalorder %s29, 0
      %p51 = por %p49, %p50
      %s53 = sadd.s32 %s52, 1
      %p56 = scmp.eq.s32.totalorder %s23, 1
      %p57 = scmp.ne.s32.totalorder %s52, %s54
      %p58 = scmp.eq.s32.totalorder %s23, 0
      %p59 = por %p57, %p58
      %p60 = scmp.ne.s32.totalorder %s52, %s54
      %p61 = scmp.eq.s32.totalorder %s28, 1
      %p62 = por %p60, %p61
      %p63 = scmp.ne.s32.totalorder %s54, %s55
      %p64 = scmp.eq.s32.totalorder %s28, 0
      %p65 = por %p63, %p64
      %p66 = scmp.ne.s32.totalorder %s54, %s55
      %p67 = scmp.eq.s32.totalorder %s29, 1
      %p68 = por %p66, %p67
      %p70 = scmp.ne.s32.totalorder %s55, %s69
      %p71 = scmp.eq.s32.totalorder %s29, 0
      %p72 = por %p70, %p71
      %s74 = sadd.s32 %s73, 1
      %p77 = scmp.eq.s32.totalorder %s23, 1
      %p78 = scmp.ne.s32.totalorder %s73, %s75
      %p79 = scmp.eq.s32.totalorder %s23, 0
      %p80 = por %p78, %p79
      %p81 = scmp.ne.s32.totalorder %s73, %s75
      %p82 = scmp.eq.s32.totalorder %s28, 1
      %p83 = por %p81, %p82
      %p84 = scmp.ne.s32.totalorder %s75, %s76
      %p85 = scmp.eq.s32.totalorder %s28, 0
      %p86 = por %p84, %p85
      %p87 = scmp.ne.s32.totalorder %s75, %s76
      %p88 = scmp.eq.s32.totalorder %s29, 1
      %p89 = por %p87, %p88
      %p91 = scmp.ne.s32.totalorder %s76, %s90
      %p92 = scmp.eq.s32.totalorder %s29, 0
      %p93 = por %p91, %p92
      %s95 = sadd.s32 %s94, 1
      %p98 = scmp.eq.s32.totalorder %s23, 1
      %p99 = scmp.ne.s32.totalorder %s94, %s96
      %p100 = scmp.eq.s32.totalorder %s23, 0
      %p101 = por %p99, %p100
      %p102 = scmp.ne.s32.totalorder %s94, %s96
      %p103 = scmp.eq.s32.totalorder %s28, 1
      %p104 = por %p102, %p103
      %p105 = scmp.ne.s32.totalorder %s96, %s97
      %p106 = scmp.eq.s32.totalorder %s28, 0
      %p107 = por %p105, %p106
      %p108 = scmp.ne.s32.totalorder %s96, %s97
      %p109 = scmp.eq.s32.totalorder %s29, 1
      %p110 = por %p108, %p109
      %p112 = scmp.ne.s32.totalorder %s97, %s111
      %p113 = scmp.eq.s32.totalorder %s29, 0
      %p114 = por %p112, %p113
      %s116 = sadd.s32 %s115, 1
      %p119 = scmp.eq.s32.totalorder %s23, 1
      %p120 = scmp.ne.s32.totalorder %s115, %s117
      %p121 = scmp.eq.s32.totalorder %s23, 0
      %p122 = por %p120, %p121
      %p123 = scmp.ne.s32.totalorder %s115, %s117
      %p124 = scmp.eq.s32.totalorder %s28, 1
      %p125 = por %p123, %p124
      %p126 = scmp.ne.s32.totalorder %s117, %s118
      %p127 = scmp.eq.s32.totalorder %s28, 0
      %p128 = por %p126, %p127
      %p129 = scmp.ne.s32.totalorder %s117, %s118
      %p130 = scmp.eq.s32.totalorder %s29, 1
      %p131 = por %p129, %p130
      %p133 = scmp.ne.s32.totalorder %s118, %s132
      %p134 = scmp.eq.s32.totalorder %s29, 0
      %p135 = por %p133, %p134
      %s137 = sadd.s32 %s136, 1
      %p140 = scmp.eq.s32.totalorder %s23, 1
      %p141 = scmp.ne.s32.totalorder %s136, %s138
      %p142 = scmp.eq.s32.totalorder %s23, 0
      %p143 = por %p141, %p142
      %p144 = scmp.ne.s32.totalorder %s136, %s138
      %p145 = scmp.eq.s32.totalorder %s28, 1
      %p146 = por %p144, %p145
      %p147 = scmp.ne.s32.totalorder %s138, %s139
      %p148 = scmp.eq.s32.totalorder %s28, 0
      %p149 = por %p147, %p148
      %p150 = scmp.ne.s32.totalorder %s138, %s139
      %p151 = scmp.eq.s32.totalorder %s29, 1
      %p152 = por %p150, %p151
      %p154 = scmp.ne.s32.totalorder %s139, %s153
      %p155 = scmp.eq.s32.totalorder %s29, 0
      %p156 = por %p154, %p155
      %s158 = sadd.s32 %s157, 1
      %p161 = scmp.eq.s32.totalorder %s23, 1
      %p162 = scmp.ne.s32.totalorder %s157, %s159
      %p163 = scmp.eq.s32.totalorder %s23, 0
      %p164 = por %p162, %p163
      %p165 = scmp.ne.s32.totalorder %s157, %s159
      %p166 = scmp.eq.s32.totalorder %s28, 1
      %p167 = por %p165, %p166
      %p168 = scmp.ne.s32.totalorder %s159, %s160
      %p169 = scmp.eq.s32.totalorder %s28, 0
      %p170 = por %p168, %p169
      %p171 = scmp.ne.s32.totalorder %s159, %s160
      %p172 = scmp.eq.s32.totalorder %s29, 1
      %p173 = por %p171, %p172
      %p175 = scmp.ne.s32.totalorder %s160, %s174
      %p176 = scmp.eq.s32.totalorder %s29, 0
      %p177 = por %p175, %p176
      %s178 = ssub.s32 %s23, %s30
      %p179 = scmp.eq.s32.totalorder %s178, 0
      %s181 = sadd.s32 %s180, 1
      %s182 = scalar_select %p179, %s180, %s181
      %p185 = pneg %p179
      %p186 = scmp.eq.s32.totalorder %s23, 1
      %p187 = por %p185, %p186
      %p188 = scmp.ne.s32.totalorder %s180, %s183
      %p189 = scmp.eq.s32.totalorder %s23, 0
      %p190 = por %p188, %p189
      %p191 = scmp.ne.s32.totalorder %s180, %s183
      %p192 = scmp.eq.s32.totalorder %s28, 1
      %p193 = por %p191, %p192
      %p194 = scmp.ne.s32.totalorder %s183, %s184
      %p195 = scmp.eq.s32.totalorder %s28, 0
      %p196 = por %p194, %p195
      %p197 = scmp.ne.s32.totalorder %s183, %s184
      %p198 = scmp.eq.s32.totalorder %s29, 1
      %p199 = por %p197, %p198
      %p201 = scmp.ne.s32.totalorder %s184, %s200
      %p202 = scmp.eq.s32.totalorder %s29, 0
      %p203 = por %p201, %p202
      %s205 = sadd.s32 %s204, 1
      %p208 = scmp.eq.s32.totalorder %s23, 1
      %p209 = scmp.ne.s32.totalorder %s204, %s206
      %p210 = scmp.eq.s32.totalorder %s23, 0
      %p211 = por %p209, %p210
      %p212 = scmp.ne.s32.totalorder %s204, %s206
      %p213 = scmp.eq.s32.totalorder %s28, 1
      %p214 = por %p212, %p213
      %p215 = scmp.ne.s32.totalorder %s206, %s207
      %p216 = scmp.eq.s32.totalorder %s28, 0
      %p217 = por %p215, %p216
      %p218 = scmp.ne.s32.totalorder %s206, %s207
      %p219 = scmp.eq.s32.totalorder %s29, 1
      %p220 = por %p218, %p219
      %p222 = scmp.ne.s32.totalorder %s207, %s221
      %p223 = scmp.eq.s32.totalorder %s29, 0
      %p224 = por %p222, %p223
      %s225 = ssub.s32 %s23, %s30
      %p226 = scmp.eq.s32.totalorder %s225, 0
      %s228 = sadd.s32 %s227, 1
      %s229 = scalar_select %p226, %s227, %s228
      %p232 = pneg %p226
      %p233 = scmp.eq.s32.totalorder %s23, 1
      %p234 = por %p232, %p233
      %p235 = scmp.ne.s32.totalorder %s227, %s230
      %p236 = scmp.eq.s32.totalorder %s23, 0
      %p237 = por %p235, %p236
      %p238 = scmp.ne.s32.totalorder %s227, %s230
      %p239 = scmp.eq.s32.totalorder %s28, 1
      %p240 = por %p238, %p239
      %p241 = scmp.ne.s32.totalorder %s230, %s231
      %p242 = scmp.eq.s32.totalorder %s28, 0
      %p243 = por %p241, %p242
      %p244 = scmp.ne.s32.totalorder %s230, %s231
      %p245 = scmp.eq.s32.totalorder %s29, 1
      %p246 = por %p244, %p245
      %p248 = scmp.ne.s32.totalorder %s231, %s247
      %p249 = scmp.eq.s32.totalorder %s29, 0
      %p250 = por %p248, %p249
      %s252 = sadd.s32 %s251, 1
      %p255 = scmp.eq.s32.totalorder %s23, 1
      %p256 = scmp.ne.s32.totalorder %s251, %s253
      %p257 = scmp.eq.s32.totalorder %s23, 0
      %p258 = por %p256, %p257
      %p259 = scmp.ne.s32.totalorder %s251, %s253
      %p260 = scmp.eq.s32.totalorder %s28, 1
      %p261 = por %p259, %p260
      %p262 = scmp.ne.s32.totalorder %s253, %s254
      %p263 = scmp.eq.s32.totalorder %s28, 0
      %p264 = por %p262, %p263
      %p265 = scmp.ne.s32.totalorder %s253, %s254
      %p266 = scmp.eq.s32.totalorder %s29, 1
      %p267 = por %p265, %p266
      %p269 = scmp.ne.s32.totalorder %s254, %s268
      %p270 = scmp.eq.s32.totalorder %s29, 0
      %p271 = por %p269, %p270
      %s273 = sadd.s32 %s272, 1
      %p276 = scmp.eq.s32.totalorder %s23, 1
      %p277 = scmp.ne.s32.totalorder %s272, %s274
      %p278 = scmp.eq.s32.totalorder %s23, 0
      %p279 = por %p277, %p278
      %p280 = scmp.ne.s32.totalorder %s272, %s274
      %p281 = scmp.eq.s32.totalorder %s28, 1
      %p282 = por %p280, %p281
      %p283 = scmp.ne.s32.totalorder %s274, %s275
      %p284 = scmp.eq.s32.totalorder %s28, 0
      %p285 = por %p283, %p284
      %p286 = scmp.ne.s32.totalorder %s274, %s275
      %p287 = scmp.eq.s32.totalorder %s29, 1
      %p288 = por %p286, %p287
      %p290 = scmp.ne.s32.totalorder %s275, %s289
      %p291 = scmp.eq.s32.totalorder %s29, 0
      %p292 = por %p290, %p291
      %s294 = sadd.s32 %s293, 1
      %p297 = scmp.eq.s32.totalorder %s23, 1
      %p298 = scmp.ne.s32.totalorder %s293, %s295
      %p299 = scmp.eq.s32.totalorder %s23, 0
      %p300 = por %p298, %p299
      %p301 = scmp.ne.s32.totalorder %s293, %s295
      %p302 = scmp.eq.s32.totalorder %s28, 1
      %p303 = por %p301, %p302
      %p304 = scmp.ne.s32.totalorder %s295, %s296
      %p305 = scmp.eq.s32.totalorder %s28, 0
      %p306 = por %p304, %p305
      %p307 = scmp.ne.s32.totalorder %s295, %s296
      %p308 = scmp.eq.s32.totalorder %s29, 1
      %p309 = por %p307, %p308
      %p311 = scmp.ne.s32.totalorder %s296, %s310
      %p312 = scmp.eq.s32.totalorder %s29, 0
      %p313 = por %p311, %p312
      %p314 = scmp.le.s32.totalorder 1, %s23
      %p315 = scmp.lt.s32.totalorder %s23, 3
      %p316 = pnand %p314, %p315
      %p317 = pneg %p316
      // Predicated region
      $region9: #{moco_forward.1} parent=5 // pred_check
        _
      $region10: #{moco_forward.1} parent=5 // pred_check_branch
        %319 = sbr.rel (%p316) target = $region12
      $region11: #{moco_forward.1} parent=5 // pred_region
        %s320 = ssub.s32 %s23, 1
        // Predicated region
        $region13: #{moco_forward.1} parent=11 // pred_check
          %p321 = pneg %p44
        $region14: #{moco_forward.1} parent=11 // pred_check_branch
          %323 = sbr.rel (%p321) target = $region16
        $region15: #{moco_forward.1} parent=11 // pred_region
          _
        $region16: #{moco_forward.1} parent=11 // pred_fallthru
          _
        // Predicated region
        $region17: #{moco_forward.1} parent=11 // pred_check
          %p324 = pneg %p65
        $region18: #{moco_forward.1} parent=11 // pred_check_branch
          %326 = sbr.rel (%p324) target = $region20
        $region19: #{moco_forward.1} parent=11 // pred_region
          _
        $region20: #{moco_forward.1} parent=11 // pred_fallthru
          _
        // Predicated region
        $region21: #{moco_forward.1} parent=11 // pred_check
          %p327 = pneg %p86
        $region22: #{moco_forward.1} parent=11 // pred_check_branch
          %329 = sbr.rel (%p327) target = $region24
        $region23: #{moco_forward.1} parent=11 // pred_region
          _
        $region24: #{moco_forward.1} parent=11 // pred_fallthru
          _
        // Predicated region
        $region25: #{moco_forward.1} parent=11 // pred_check
          %p330 = pneg %p107
        $region26: #{moco_forward.1} parent=11 // pred_check_branch
          %332 = sbr.rel (%p330) target = $region28
        $region27: #{moco_forward.1} parent=11 // pred_region
          _
        $region28: #{moco_forward.1} parent=11 // pred_fallthru
          _
        // Predicated region
        $region29: #{moco_forward.1} parent=11 // pred_check
          %p333 = pneg %p128
        $region30: #{moco_forward.1} parent=11 // pred_check_branch
          %335 = sbr.rel (%p333) target = $region32
        $region31: #{moco_forward.1} parent=11 // pred_region
          _
        $region32: #{moco_forward.1} parent=11 // pred_fallthru
          _
        // Predicated region
        $region33: #{moco_forward.1} parent=11 // pred_check
          %p336 = pneg %p149
        $region34: #{moco_forward.1} parent=11 // pred_check_branch
          %338 = sbr.rel (%p336) target = $region36
        $region35: #{moco_forward.1} parent=11 // pred_region
          _
        $region36: #{moco_forward.1} parent=11 // pred_fallthru
          _
        // Predicated region
        $region37: #{moco_forward.1} parent=11 // pred_check
          %p339 = pneg %p170
        $region38: #{moco_forward.1} parent=11 // pred_check_branch
          %341 = sbr.rel (%p339) target = $region40
        $region39: #{moco_forward.1} parent=11 // pred_region
          _
        $region40: #{moco_forward.1} parent=11 // pred_fallthru
          _
      $region12: #{moco_forward.1} parent=5 // pred_fallthru
        _
      %p342 = scmp.lt.s32.totalorder %s23, 2
      // Predicated region
      $region41: #{moco_forward.1} parent=5 // pred_check
        %p343 = pneg %p342
      $region42: #{moco_forward.1} parent=5 // pred_check_branch
        %345 = sbr.rel (%p343) target = $region44
      $region43: #{moco_forward.1} parent=5 // pred_region
        // Predicated region
        $region45: #{moco_forward.1} parent=43 // pred_check
          %p346 = pneg %p190
        $region46: #{moco_forward.1} parent=43 // pred_check_branch
          %348 = sbr.rel (%p346) target = $region48
        $region47: #{moco_forward.1} parent=43 // pred_region
          %s349 = smul.u32 16, %s23
          %p350 = scmp.lt.s32.totalorder %s349, 31
          %s351 = scalar_select %p350, %s349, 31
          %s352 = smul.addr %s351, 8
          %s353 = scalar_lea.vmem %s7, %s352
          %s354 = smul.u32 16, %s23
        $region48: #{moco_forward.1} parent=43 // pred_fallthru
          _
      $region44: #{moco_forward.1} parent=5 // pred_fallthru
        _
      %p355 = scmp.le.s32.totalorder 1, %s23
      %p356 = scmp.lt.s32.totalorder %s23, 3
      %p357 = pnand %p355, %p356
      %p358 = pneg %p357
      // Predicated region
      $region49: #{moco_forward.1} parent=5 // pred_check
        _
      $region50: #{moco_forward.1} parent=5 // pred_check_branch
        %360 = sbr.rel (%p357) target = $region52
      $region51: #{moco_forward.1} parent=5 // pred_region
        %s361 = ssub.s32 %s23, 1
        %p362 = pneg %p44
        %p363 = pneg %p41
        %p364 = pneg %p65
        %p365 = pneg %p62
        %p366 = pneg %p86
        %p367 = pneg %p83
        %p368 = pneg %p107
        %p369 = pneg %p104
        %p370 = pneg %p128
        %p371 = pneg %p125
        %p372 = pneg %p149
        %p373 = pneg %p146
        %p374 = pneg %p170
        %p375 = pneg %p167
        %s376 = smul.u32 16, %s28
        %p377 = scmp.lt.s32.totalorder %s376, 31
        %s378 = scalar_select %p377, %s376, 31
        %s379 = smul.addr %s378, 8
        %s380 = scalar_lea.vmem %s7, %s379
        %p381 = pneg %p196
        %p382 = pneg %p193
        %p383 = pneg %p217
        %p384 = pneg %p214
        %p385 = pneg %p243
        %p386 = pneg %p240
        %p387 = scmp.lt.s32.totalorder %s28, 1
        %s388 = scalar_select %p387, %s28, 1
        %s389 = smul.addr %s388, 2
        %s390 = scalar_lea.vmem %s9, %s389
        %p391 = pneg %p264
        %p392 = pneg %p261
        %p393 = pneg %p285
        %p394 = pneg %p282
        %p395 = pneg %p306
        %p396 = pneg %p303
        %s397 = smul.u32 16, %s28
        %p398 = scmp.lt.s32.totalorder %s397, 31
        %s399 = scalar_select %p398, %s397, 31
        %s400 = smul.addr %s399, 8
        %s401 = scalar_lea.vmem %s7, %s400
        %s402 = smul.u32 16, %s28
        %p403 = scmp.lt.s32.totalorder %s28, 1
        %s404 = scalar_select %p403, %s28, 1
        %s405 = smul.addr %s404, 2
        %s406 = scalar_lea.vmem %s9, %s405
        %p407 = scmp.eq.s32.totalorder %s28, 0
        // Predicated region
        $region53: #{moco_forward.1} parent=51 // pred_check
          %p408 = pneg %p407
        $region54: #{moco_forward.1} parent=51 // pred_check_branch
          %410 = sbr.rel (%p408) target = $region56
        $region55: #{moco_forward.1} parent=51 // pred_region
          %v411 = vld [vmem:[%s5] sm:$0xff]
          %v412 = vld [vmem:[%s5 + $0x8] sm:$0xff]
          %v413 = vld [vmem:[%s5 + $0x10] sm:$0xff]
          %v414 = vld [vmem:[%s5 + $0x18] sm:$0xff]
          %v415 = vmul.f32 %v411, 0.999
          %v416 = vmul.f32 %v412, 0.999
          %v417 = vmul.f32 %v413, 0.999
          %v418 = vmul.f32 %v414, 0.999
          %v419 = vld [vmem:[%s3] sm:$0xff]
          %v420 = vld [vmem:[%s3 + $0x8] sm:$0xff]
          %v421 = vld [vmem:[%s3 + $0x10] sm:$0xff]
          %v422 = vld [vmem:[%s3 + $0x18] sm:$0xff]
          %v423 = vmul.f32 %v419, 0.001
          %v424 = vmul.f32 %v420, 0.001
          %v425 = vmul.f32 %v421, 0.001
          %v426 = vmul.f32 %v422, 0.001
          %v427 = vadd.f32 %v415, %v423
          %v428 = vadd.f32 %v416, %v424
          %v429 = vadd.f32 %v417, %v425
          %v430 = vadd.f32 %v418, %v426
          %v431 = vld [vmem:[%s6] sm:$0x1]
          %v432 = vmul.f32 %v431, 0.999
          %v433 = vld [vmem:[%s4] sm:$0x1]
          %v434 = vmul.f32 %v433, 0.001
          %v435 = vadd.f32 %v432, %v434
          %vm436 = vcmask 523264
          %437 = vst.msk [vmem:[#allocation8] sm:$0xff] %vm436, %v427
          %438 = vst.msk [vmem:[#allocation8 + $0x8] sm:$0xff] %vm436, %v428
          %439 = vst.msk [vmem:[#allocation8 + $0x10] sm:$0xff] %vm436, %v429
          %440 = vst.msk [vmem:[#allocation8 + $0x18] sm:$0xff] %vm436, %v430
          %vm441 = vcmask 253952
          %442 = vst.msk [vmem:[#allocation10] sm:$0x1] %vm441, %v435
          %v443 = vld [vmem:[%s1] sm:$0x3]
          %v444 = vld [vmem:[%s3] sm:$0xff]
          %v445 = vld [vmem:[%s3 + $0x8] sm:$0xff]
          %v446 = vld [vmem:[%s3 + $0x10] sm:$0xff]
          %v447 = vld [vmem:[%s3 + $0x18] sm:$0xff]
          %v448 = vld [vmem:[%s4] sm:$0x1]
          %v450 = vperm.slane %v448, 0
          %v453 = vsel %vm436, %v443, 0
          %v456 = vsel %vm436, %v444, 0
          %v459 = vsel %vm436, %v445, 0
          %v462 = vsel %vm436, %v446, 0
          %v465 = vsel %vm436, %v447, 0
          %467 = vmatpush.xpose.msra.mxu0 0.0
          %468 = vmatpush.xpose.msra.mxu0 0.0
          %469 = vmatpush.xpose.msra.mxu0 0.0
          %470 = vmatpush.xpose.msra.mxu0 0.0
          %471 = vmatpush.xpose.msra.mxu0 0.0
          %472 = vmatpush.xpose.msra.mxu0 0.0
          %473 = vmatpush.xpose.msra.mxu0 0.0
          %474 = vmatpush.xpose.msra.mxu0 0.0
          %475 = vmatpush.xpose.msra.mxu0 0.0
          %476 = vmatpush.xpose.msra.mxu0 0.0
          %477 = vmatpush.xpose.msra.mxu0 0.0
          %478 = vmatpush.xpose.msra.mxu0 0.0
          %479 = vmatpush.xpose.msra.mxu0 %v465
          %480 = vmatpush.xpose.msra.mxu0 %v462
          %481 = vmatpush.xpose.msra.mxu0 %v459
          %482 = vmatpush.xpose.msra.mxu0 %v456
          %483 = vmatmul.f32.gmra.mxu0 %v453
          %v484 = vpop.f32.mrf.mxu0
          %v485 = vadd.f32 %v450, %v484
          %486 = vdwg.mxu0
          %v487 = vld [vmem:[%s2] sm:$0x3]
          %v489 = vperm.slane %v435, 0
          %v492 = vsel %vm436, %v487, 0
          %v495 = vsel %vm436, %v427, 0
          %v498 = vsel %vm436, %v428, 0
          %v501 = vsel %vm436, %v429, 0
          %v504 = vsel %vm436, %v430, 0
          %506 = vmatpush.xpose.msra.mxu0 0.0
          %507 = vmatpush.xpose.msra.mxu0 0.0
          %508 = vmatpush.xpose.msra.mxu0 0.0
          %509 = vmatpush.xpose.msra.mxu0 0.0
          %510 = vmatpush.xpose.msra.mxu0 0.0
          %511 = vmatpush.xpose.msra.mxu0 0.0
          %512 = vmatpush.xpose.msra.mxu0 0.0
          %513 = vmatpush.xpose.msra.mxu0 0.0
          %514 = vmatpush.xpose.msra.mxu0 0.0
          %515 = vmatpush.xpose.msra.mxu0 0.0
          %516 = vmatpush.xpose.msra.mxu0 0.0
          %517 = vmatpush.xpose.msra.mxu0 0.0
          %518 = vmatpush.xpose.msra.mxu0 %v504
          %519 = vmatpush.xpose.msra.mxu0 %v501
          %520 = vmatpush.xpose.msra.mxu0 %v498
          %521 = vmatpush.xpose.msra.mxu0 %v495
          %522 = vmatmul.f32.gmra.mxu0 %v492
          %v523 = vpop.f32.mrf.mxu0
          %v524 = vadd.f32 %v489, %v523
          %525 = vdwg.mxu0
          %vm526 = vcmask 254976
          %527 = vst.msk [vmem:[#allocation6] sm:$0x3] %vm526, %v485
          %v528 = vmul.f32 %v485, %v485
          %v529 = vsel %vm526, %v528, 0.0
          %530 = vadd.xlane.f32.xlu0 %v529
          %v531 = vpop.xlane.xlu0 %530
          %v532 = vmax.f32 %v531, 1e-24
          %v533 = vrsqrt.pop %v532
          %v534 = vmul.f32 %v533, %v532
          %v535 = vmul.f32 %v534, %v533
          %v536 = vmul.f32 0.5, %v535
          %v537 = vsub.f32 1.5, %v536
          %v538 = vmul.f32 %v533, %v537
          %vm539 = vweird.f32 %v532
          %vm540 = vweird.f32 %v533
          %vm541 = vmor %vm539, %vm540
          %v542 = vsel %vm541, %v533, %v538
          %v543 = vmul.f32 %v485, %v542
          %v544 = vmul.f32 %v524, %v524
          %v545 = vsel %vm526, %v544, 0.0
          %546 = vadd.xlane.f32.xlu0 %v545
          %v547 = vpop.xlane.xlu0 %546
          %v548 = vmax.f32 %v547, 1e-24
          %v549 = vrsqrt.pop %v548
          %v550 = vmul.f32 %v549, %v548
          %v551 = vmul.f32 %v550, %v549
          %v552 = vmul.f32 0.5, %v551
          %v553 = vsub.f32 1.5, %v552
          %v554 = vmul.f32 %v549, %v553
          %vm555 = vweird.f32 %v548
          %vm556 = vweird.f32 %v549
          %vm557 = vmor %vm555, %vm556
          %v558 = vsel %vm557, %v549, %v554
          %v559 = vmul.f32 %v524, %v558
          %560 = vst.msk [vmem:[#allocation2] sm:$0x3] %vm526, %v543
          %561 = vst.msk [vmem:[#allocation3] sm:$0x3] %vm526, %v559
          %v562 = vmul.f32 %v543, %v559
          %v563 = vsel %vm526, %v562, 0.0
          %564 = vadd.xlane.f32.xlu0 %v563
          %v565 = vpop.xlane.xlu0 %564
          %v566 = vmul.f32 %v565, 14.285714
          %vm567 = vcmask 1024
          %568 = vst.msk [vmem:[%s8] sm:$0x3] %vm567, %v566
        $region56: #{moco_forward.1} parent=51 // pred_fallthru
          _
        %v569 = vld [vmem:[#allocation2] sm:$0x3]
        %v570 = vld [vmem:[%s401] sm:$0xff]
        %v571 = vld [vmem:[%s401 + $0x8] sm:$0xff]
        %v572 = vld [vmem:[%s401 + $0x10] sm:$0xff]
        %v573 = vld [vmem:[%s401 + $0x18] sm:$0xff]
        %v574 = vld [vmem:[%s401 + $0x20] sm:$0xff]
        %v575 = vld [vmem:[%s401 + $0x28] sm:$0xff]
        %v576 = vld [vmem:[%s401 + $0x30] sm:$0xff]
        %v577 = vld [vmem:[%s401 + $0x38] sm:$0xff]
        %v578 = vld [vmem:[%s401 + $0x40] sm:$0xff]
        %v579 = vld [vmem:[%s401 + $0x48] sm:$0xff]
        %v580 = vld [vmem:[%s401 + $0x50] sm:$0xff]
        %v581 = vld [vmem:[%s401 + $0x58] sm:$0xff]
        %v582 = vld [vmem:[%s401 + $0x60] sm:$0xff]
        %v583 = vld [vmem:[%s401 + $0x68] sm:$0xff]
        %v584 = vld [vmem:[%s401 + $0x70] sm:$0xff]
        %v585 = vld [vmem:[%s401 + $0x78] sm:$0xff]
        %vm586 = vcmask 261120
        %v588 = vsel %vm586, %v569, 0
        %v591 = vsel %vm586, %v570, 0
        %v594 = vsel %vm586, %v571, 0
        %v597 = vsel %vm586, %v572, 0
        %v600 = vsel %vm586, %v573, 0
        %v603 = vsel %vm586, %v574, 0
        %v606 = vsel %vm586, %v575, 0
        %v609 = vsel %vm586, %v576, 0
        %v612 = vsel %vm586, %v577, 0
        %v615 = vsel %vm586, %v578, 0
        %v618 = vsel %vm586, %v579, 0
        %v621 = vsel %vm586, %v580, 0
        %v624 = vsel %vm586, %v581, 0
        %v627 = vsel %vm586, %v582, 0
        %v630 = vsel %vm586, %v583, 0
        %v633 = vsel %vm586, %v584, 0
        %v636 = vsel %vm586, %v585, 0
        %638 = vmatpush.xpose.msra.mxu0 %v636
        %639 = vmatpush.xpose.msra.mxu0 %v633
        %640 = vmatpush.xpose.msra.mxu0 %v630
        %641 = vmatpush.xpose.msra.mxu0 %v627
        %642 = vmatpush.xpose.msra.mxu0 %v624
        %643 = vmatpush.xpose.msra.mxu0 %v621
        %644 = vmatpush.xpose.msra.mxu0 %v618
        %645 = vmatpush.xpose.msra.mxu0 %v615
        %646 = vmatpush.xpose.msra.mxu0 %v612
        %647 = vmatpush.xpose.msra.mxu0 %v609
        %648 = vmatpush.xpose.msra.mxu0 %v606
        %649 = vmatpush.xpose.msra.mxu0 %v603
        %650 = vmatpush.xpose.msra.mxu0 %v600
        %651 = vmatpush.xpose.msra.mxu0 %v597
        %652 = vmatpush.xpose.msra.mxu0 %v594
        %653 = vmatpush.xpose.msra.mxu0 %v591
        %654 = vmatmul.f32.gmra.mxu0 %v588
        %v655 = vpop.f32.mrf.mxu0
        %v656 = vadd.f32 0.0, %v655
        %657 = vdwg.mxu0
        %v658 = vmul.f32 %v656, 14.285714
        %659 = vst [vmem:[%s406] sm:$0x3] %v658
        %p660 = scmp.eq.s32.totalorder %s28, 1
        // Predicated region
        $region57: #{moco_forward.1} parent=51 // pred_check
          %p661 = pneg %p660
        $region58: #{moco_forward.1} parent=51 // pred_check_branch
          %663 = sbr.rel (%p661) target = $region60
        $region59: #{moco_forward.1} parent=51 // pred_region
          %s664 = sld [smem:[#allocation5]]
          %s665 = scalar_lea.vmem %s13, %s664
          // Predicated region
          $region61: #{moco_forward.1} parent=59 // pred_check
            _
          $region62: #{moco_forward.1} parent=59 // pred_check_branch
            %667 = sbr.rel target = $region64
          $region63: #{moco_forward.1} parent=59 // pred_region
            // Predicated region
            $region76: #{moco_forward.1} parent=63 // pred_check
              _
            $region77: #{moco_forward.1} parent=63 // pred_check_branch
              %683 = sbr.rel (0) target = $region79
            $region78: #{moco_forward.1} parent=63 // pred_region
              %s685 = ssub.s32 4, 1
              loop: start=0, step=1, limit=1
              $region80: #{moco_forward.1} parent=78 // loop_pre_header
                _
              $region81: #{moco_forward.1} parent=78 // loop_header
                %s687 = sphi 0, %s691
                %p688 = scmp.ge.s32.totalorder %s687, 1
                %s692 = sphi [#allocation3], [#allocation3]
                %s693 = sphi %s665, %s665
              $region82: #{moco_forward.1} parent=78 // loop_header_branch
                %690 = sbr.rel (%p688) target = $region86
              $region83: #{moco_forward.1} parent=78 // loop_body
                %v694 = vld [vmem:[%s692] sm:%s685]
                %695 = vst [vmem:[%s693] sm:%s685] %v694
              $region84: #{moco_forward.1} parent=78 // loop_footer
                %s691 = sadd.s32 1, %s687
              $region85: #{moco_forward.1} parent=78 // loop_footer_branch
                %686 = sbr.rel target = $region81
              $region86: #{moco_forward.1} parent=78 // loop_exit
                _
            $region79: #{moco_forward.1} parent=63 // pred_fallthru
              _
          $region64: #{moco_forward.1} parent=59 // pred_fallthru
            _
          // Predicated region
          $region65: #{moco_forward.1} parent=59 // pred_check
            _
          $region66: #{moco_forward.1} parent=59 // pred_check_branch
            %669 = sbr.rel (0) target = $region68
          $region67: #{moco_forward.1} parent=59 // pred_region
            %s671 = ssub.s32 4, 1
            loop: start=0, step=1, limit=1
            $region69: #{moco_forward.1} parent=67 // loop_pre_header
              _
            $region70: #{moco_forward.1} parent=67 // loop_header
              %s673 = sphi 0, %s677
              %p674 = scmp.ge.s32.totalorder %s673, 1
              %s678 = sphi [#allocation3], [#allocation3]
              %s679 = sphi %s665, %s665
            $region71: #{moco_forward.1} parent=67 // loop_header_branch
              %676 = sbr.rel (%p674) target = $region75
            $region72: #{moco_forward.1} parent=67 // loop_body
              %v680 = vld [vmem:[%s678] sm:%s671]
              %681 = vst [vmem:[%s679] sm:%s671] %v680
            $region73: #{moco_forward.1} parent=67 // loop_footer
              %s677 = sadd.s32 1, %s673
            $region74: #{moco_forward.1} parent=67 // loop_footer_branch
              %672 = sbr.rel target = $region70
            $region75: #{moco_forward.1} parent=67 // loop_exit
              _
          $region68: #{moco_forward.1} parent=59 // pred_fallthru
            _
          // Predicated region
          $region87: #{moco_forward.1} parent=59 // pred_check
            _
          $region88: #{moco_forward.1} parent=59 // pred_check_branch
            %698 = sbr.rel (0) target = $region90
          $region89: #{moco_forward.1} parent=59 // pred_region
            %699 = vsyncadd [#allocation4], 32
          $region90: #{moco_forward.1} parent=59 // pred_fallthru
            _
          %s700 = smul.u32 2, 1
          %s701 = sshll.u32 %s700, 4
          %702 = dma.done [#allocation4], %s701
        $region60: #{moco_forward.1} parent=51 // pred_fallthru
          _
        %p703 = scmp.lt.s32.totalorder %s28, 1
        %s704 = scalar_select %p703, %s28, 1
        %s705 = smul.addr %s704, 2
        %s706 = scalar_lea.vmem %s9, %s705
        // Predicated region
        $region91: #{moco_forward.1} parent=51 // pred_check
          %p707 = pneg %p214
        $region92: #{moco_forward.1} parent=51 // pred_check_branch
          %709 = sbr.rel (%p707) target = $region94
        $region93: #{moco_forward.1} parent=51 // pred_region
          _
        $region94: #{moco_forward.1} parent=51 // pred_fallthru
          _
        // Predicated region
        $region95: #{moco_forward.1} parent=51 // pred_check
          %p710 = pneg %p240
        $region96: #{moco_forward.1} parent=51 // pred_check_branch
          %712 = sbr.rel (%p710) target = $region98
        $region97: #{moco_forward.1} parent=51 // pred_region
          _
        $region98: #{moco_forward.1} parent=51 // pred_fallthru
          _
        // Predicated region
        $region99: #{moco_forward.1} parent=51 // pred_check
          %p713 = pneg %p261
        $region100: #{moco_forward.1} parent=51 // pred_check_branch
          %715 = sbr.rel (%p713) target = $region102
        $region101: #{moco_forward.1} parent=51 // pred_region
          %717 = vsyncadd [#allocation7], 0
          %s719 = sshll.u32 [#allocation6], 4
          %s720 = int_to_ptr.vmem [resolvable:$true] %s719
          %s721 = sshll.u32 %s10, 4
          %s722 = int_to_ptr.hbm [resolvable:$true] %s721
          %724 = dma.vmem_to_hbm [thread:$0]  %s720, 32, %s722, [#allocation7]
        $region102: #{moco_forward.1} parent=51 // pred_fallthru
          _
        // Predicated region
        $region103: #{moco_forward.1} parent=51 // pred_check
          %p725 = pneg %p282
        $region104: #{moco_forward.1} parent=51 // pred_check_branch
          %727 = sbr.rel (%p725) target = $region106
        $region105: #{moco_forward.1} parent=51 // pred_region
          %729 = vsyncadd [#allocation9], 0
          %s730 = sshll.u32 [#allocation8], 4
          %s731 = int_to_ptr.vmem [resolvable:$true] %s730
          %s732 = sshll.u32 %s11, 4
          %s733 = int_to_ptr.hbm [resolvable:$true] %s732
          %738 = dma.vmem_to_hbm [thread:$0]  %s731, 512, %s733, [#allocation9], 128, 128, 8
        $region106: #{moco_forward.1} parent=51 // pred_fallthru
          _
        // Predicated region
        $region107: #{moco_forward.1} parent=51 // pred_check
          %p739 = pneg %p303
        $region108: #{moco_forward.1} parent=51 // pred_check_branch
          %741 = sbr.rel (%p739) target = $region110
        $region109: #{moco_forward.1} parent=51 // pred_region
          %743 = vsyncadd [#allocation9], 0
          %s745 = sshll.u32 [#allocation10], 4
          %s746 = int_to_ptr.vmem [resolvable:$true] %s745
          %s747 = sshll.u32 %s12, 4
          %s748 = int_to_ptr.hbm [resolvable:$true] %s747
          %750 = dma.vmem_to_hbm [thread:$0]  %s746, 16, %s748, [#allocation9]
        $region110: #{moco_forward.1} parent=51 // pred_fallthru
          _
        // Predicated region
        $region111: #{moco_forward.1} parent=51 // pred_check
          %p751 = pneg %p214
        $region112: #{moco_forward.1} parent=51 // pred_check_branch
          %753 = sbr.rel (%p751) target = $region114
        $region113: #{moco_forward.1} parent=51 // pred_region
          _
        $region114: #{moco_forward.1} parent=51 // pred_fallthru
          _
        // Predicated region
        $region115: #{moco_forward.1} parent=51 // pred_check
          %p754 = pneg %p261
        $region116: #{moco_forward.1} parent=51 // pred_check_branch
          %756 = sbr.rel (%p754) target = $region118
        $region117: #{moco_forward.1} parent=51 // pred_region
          %758 = dma.done [#allocation7], 32
        $region118: #{moco_forward.1} parent=51 // pred_fallthru
          _
        // Predicated region
        $region119: #{moco_forward.1} parent=51 // pred_check
          %p759 = pneg %p282
        $region120: #{moco_forward.1} parent=51 // pred_check_branch
          %761 = sbr.rel (%p759) target = $region122
        $region121: #{moco_forward.1} parent=51 // pred_region
          %763 = dma.done [#allocation9], 512
        $region122: #{moco_forward.1} parent=51 // pred_fallthru
          _
        // Predicated region
        $region123: #{moco_forward.1} parent=51 // pred_check
          %p764 = pneg %p303
        $region124: #{moco_forward.1} parent=51 // pred_check_branch
          %766 = sbr.rel (%p764) target = $region126
        $region125: #{moco_forward.1} parent=51 // pred_region
          %768 = dma.done [#allocation9], 16
        $region126: #{moco_forward.1} parent=51 // pred_fallthru
          _
      $region52: #{moco_forward.1} parent=5 // pred_fallthru
        _
      %p769 = scmp.le.s32.totalorder 2, %s23
      // Predicated region
      $region127: #{moco_forward.1} parent=5 // pred_check
        %p770 = pneg %p769
      $region128: #{moco_forward.1} parent=5 // pred_check_branch
        %772 = sbr.rel (%p770) target = $region130
      $region129: #{moco_forward.1} parent=5 // pred_region
        %s773 = ssub.s32 %s23, 2
        // Predicated region
        $region131: #{moco_forward.1} parent=129 // pred_check
          %p774 = pneg %p246
        $region132: #{moco_forward.1} parent=129 // pred_check_branch
          %776 = sbr.rel (%p774) target = $region134
        $region133: #{moco_forward.1} parent=129 // pred_region
          %p777 = scmp.lt.s32.totalorder %s29, 1
          %s778 = scalar_select %p777, %s29, 1
          %s779 = smul.addr %s778, 2
          %s780 = scalar_lea.vmem %s9, %s779
        $region134: #{moco_forward.1} parent=129 // pred_fallthru
          _
      $region130: #{moco_forward.1} parent=5 // pred_fallthru
        _
    $region6: #{moco_forward.1} parent=1 // loop_footer
      %s27 = sadd.s32 1, %s23
    $region7: #{moco_forward.1} parent=1 // loop_footer_branch
      %22 = sbr.rel target = $region3
    $region8: #{moco_forward.1} parent=1 // loop_exit
      _
    %781 = vsyncpa [#allocation7], 1
    %s782 = scalar_lea.sflag [#allocation7], 1
    %783 = vsyncpa %s782, 1
    %784 = vsyncpa [#allocation9], 1
  %785 = vsyncmov [#allocation4]
  %s786 = vpop.sfrf %785
  %p787 = scmp.eq.s32.totalorder %s786, 0
  %p788 = pneg %p787
  %790 = shalt.err (%p788)

</llo_original>
